<compile_context>
chip_gen: v6e
topology: v6e:2x2x1
jax: 0.10.0
libtpu: 0.0.40
codegen_flags: <defaults>
</compile_context>

<pallas_src>
import jax
import jax.numpy as jnp
from jax.experimental import pallas as pl
from jax.experimental.pallas import tpu as pltpu


def mlp_kernel(x_ref, w1_ref, b1_ref, w2_ref, b2_ref, w3_ref, b3_ref, o_ref):
    # x_ref: (8, TILE_N)  -- batch on the lane axis, features on sublanes.
    # w_i:   (out, in) PyTorch layout, b_i: (out, 1) broadcast over lanes.
    x = x_ref[...]
    h1 = jax.nn.sigmoid(
        jnp.dot(w1_ref[...], x, preferred_element_type=jnp.float32) + b1_ref[...])
    h2 = jax.nn.sigmoid(
        jnp.dot(w2_ref[...], h1, preferred_element_type=jnp.float32) + b2_ref[...])
    h3 = jax.nn.sigmoid(
        jnp.dot(w3_ref[...], h2, preferred_element_type=jnp.float32) + b3_ref[...])
    o_ref[...] = h3.astype(o_ref.dtype)  # (1, TILE_N) lane-dense store


def mlp_forward(x, w1, b1, w2, b2, w3, b3, *, tile_n=512):
    """x: (N, 8) float32.  Weights in PyTorch layout: W_i (out, in), b_i (out, 1).
    Returns (N, 1) float32 == sigmoid(sigmoid(sigmoid(x W1^T + b1) W2^T + b2) W3^T + b3)."""
    n = x.shape[0]
    # Lane-dense compute layout: (features, batch). Wrapper-side transpose is
    # pure layout plumbing and lets every in-kernel store be full lane width.
    x_t = x.T  # (8, N)
    n_pad = pl.cdiv(n, tile_n) * tile_n
    if n_pad != n:
        x_t = jnp.pad(x_t, ((0, 0), (0, n_pad - n)))  # tail columns sliced off below

    grid = (n_pad // tile_n,)
    resident = lambda arr: pl.BlockSpec(arr.shape, lambda i: (0, 0))  # stays in VMEM

    cost = pl.CostEstimate(
        flops=2 * n_pad * (8 * 6 + 6 * 4 + 4 * 1),
        transcendentals=n_pad * (6 + 4 + 1),
        bytes_accessed=n_pad * (8 + 1) * 4 + 4 * (6 * 8 + 6 + 4 * 6 + 4 + 1 * 4 + 1),
    )

    out = pl.pallas_call(
        mlp_kernel,
        out_shape=jax.ShapeDtypeStruct((1, n_pad), jnp.float32),
        grid_spec=pl.GridSpec(
            grid=grid,
            in_specs=[
                pl.BlockSpec((8, tile_n), lambda i: (0, i)),  # activations tiled along batch
                resident(w1), resident(b1),
                resident(w2), resident(b2),
                resident(w3), resident(b3),
            ],
            out_specs=pl.BlockSpec((1, tile_n), lambda i: (0, i)),
        ),
        compiler_params=pltpu.CompilerParams(
            dimension_semantics=("parallel",),  # batch axis is embarrassingly parallel
        ),
        cost_estimate=cost,
    )(x_t, w1, b1, w2, b2, w3, b3)

    return out[0, :n].reshape(n, 1)


def init_params(key):
    """PyTorch-style init: W_i (out, in), b_i (out, 1), U(-1/sqrt(fan_in), +1/sqrt(fan_in))."""
    dims = [(8, 6), (6, 4), (4, 1)]
    params = []
    for fan_in, fan_out in dims:
        key, k_w, k_b = jax.random.split(key, 3)
        bound = float(fan_in) ** -0.5
        w = jax.random.uniform(k_w, (fan_out, fan_in), jnp.float32, -bound, bound)
        b = jax.random.uniform(k_b, (fan_out, 1), jnp.float32, -bound, bound)
        params.extend([w, b])
    return params


def reference_forward(x, w1, b1, w2, b2, w3, b3):
    h = jax.nn.sigmoid(x @ w1.T + b1.T)
    h = jax.nn.sigmoid(h @ w2.T + b2.T)
    return jax.nn.sigmoid(h @ w3.T + b3.T)


if __name__ == "__main__":
    key = jax.random.PRNGKey(0)
    k_x, k_p = jax.random.split(key)

    batch = 1000  # not a multiple of tile_n -> exercises wrapper-side padding + tail slice
    x = jax.random.normal(k_x, (batch, 8), jnp.float32)
    params = init_params(k_p)

    out = jax.block_until_ready(mlp_forward(x, *params, tile_n=512))
    ref = reference_forward(x, *params)

    assert out.shape == (batch, 1), out.shape
    assert jnp.allclose(out, ref, atol=1e-5, rtol=1e-5), "mismatch vs reference"

    print("KERNEL_OK")
</pallas_src>

<mosaic_0001>
module attributes {stable_mosaic.version = 11 : i64} {
  func.func @mlp_kernel(%arg0: i32, %arg1: memref<8x512xf32, #tpu.memory_space<vmem>>, %arg2: memref<6x8xf32, #tpu.memory_space<vmem>>, %arg3: memref<6x1xf32, #tpu.memory_space<vmem>>, %arg4: memref<4x6xf32, #tpu.memory_space<vmem>>, %arg5: memref<4x1xf32, #tpu.memory_space<vmem>>, %arg6: memref<1x4xf32, #tpu.memory_space<vmem>>, %arg7: memref<1x1xf32, #tpu.memory_space<vmem>>, %arg8: memref<1x512xf32, #tpu.memory_space<vmem>>) attributes {dimension_semantics = [#tpu.dimension_semantics<parallel>], iteration_bounds = array<i64: 2>, scalar_prefetch = 0 : i64, scratch_operands = 0 : i64, tpu.core_type = #tpu.core_type<tc>, window_params = [{transform_indices = @transform_0, window_bounds = array<i64: 8, 512>}, {pipeline_mode = #tpu.pipeline_mode<synchronous>, transform_indices = @transform_1, window_bounds = array<i64: 6, 8>}, {pipeline_mode = #tpu.pipeline_mode<synchronous>, transform_indices = @transform_2, window_bounds = array<i64: 6, 1>}, {pipeline_mode = #tpu.pipeline_mode<synchronous>, transform_indices = @transform_3, window_bounds = array<i64: 4, 6>}, {pipeline_mode = #tpu.pipeline_mode<synchronous>, transform_indices = @transform_4, window_bounds = array<i64: 4, 1>}, {pipeline_mode = #tpu.pipeline_mode<synchronous>, transform_indices = @transform_5, window_bounds = array<i64: 1, 4>}, {pipeline_mode = #tpu.pipeline_mode<synchronous>, transform_indices = @transform_6, window_bounds = array<i64: 1, 1>}, {transform_indices = @transform_7, window_bounds = array<i64: 1, 512>}]} {
    %c0 = arith.constant 0 : index
    %c0_0 = arith.constant 0 : index
    %0 = vector.load %arg1[%c0, %c0_0] : memref<8x512xf32, #tpu.memory_space<vmem>>, vector<8x512xf32>
    %c0_1 = arith.constant 0 : index
    %c0_2 = arith.constant 0 : index
    %1 = vector.load %arg2[%c0_1, %c0_2] : memref<6x8xf32, #tpu.memory_space<vmem>>, vector<6x8xf32>
    %cst = arith.constant dense<0.000000e+00> : vector<6x512xf32>
    %2 = tpu.matmul %1, %0, %cst {dimension_numbers = #tpu.dot_dimension_numbers<[1], [0], [0], [1], [0, 0, 1, 1], [], []>} : vector<6x8xf32>, vector<8x512xf32>, vector<6x512xf32> -> vector<6x512xf32>
    %c0_3 = arith.constant 0 : index
    %c0_4 = arith.constant 0 : index
    %3 = vector.load %arg3[%c0_3, %c0_4] : memref<6x1xf32, #tpu.memory_space<vmem>>, vector<6x1xf32>
    %4 = vector.broadcast %3 : vector<6x1xf32> to vector<6x512xf32>
    %5 = arith.addf %2, %4 : vector<6x512xf32>
    %6 = arith.negf %5 : vector<6x512xf32>
    %7 = math.exp %6 : vector<6x512xf32>
    %cst_5 = arith.constant 1.000000e+00 : f32
    %8 = vector.broadcast %cst_5 : f32 to vector<6x512xf32>
    %9 = arith.addf %8, %7 : vector<6x512xf32>
    %10 = arith.divf %8, %9 : vector<6x512xf32>
    %c0_6 = arith.constant 0 : index
    %c0_7 = arith.constant 0 : index
    %11 = vector.load %arg4[%c0_6, %c0_7] : memref<4x6xf32, #tpu.memory_space<vmem>>, vector<4x6xf32>
    %cst_8 = arith.constant dense<0.000000e+00> : vector<4x512xf32>
    %12 = tpu.matmul %11, %10, %cst_8 {dimension_numbers = #tpu.dot_dimension_numbers<[1], [0], [0], [1], [0, 0, 1, 1], [], []>} : vector<4x6xf32>, vector<6x512xf32>, vector<4x512xf32> -> vector<4x512xf32>
    %c0_9 = arith.constant 0 : index
    %c0_10 = arith.constant 0 : index
    %13 = vector.load %arg5[%c0_9, %c0_10] : memref<4x1xf32, #tpu.memory_space<vmem>>, vector<4x1xf32>
    %14 = vector.broadcast %13 : vector<4x1xf32> to vector<4x512xf32>
    %15 = arith.addf %12, %14 : vector<4x512xf32>
    %16 = arith.negf %15 : vector<4x512xf32>
    %17 = math.exp %16 : vector<4x512xf32>
    %cst_11 = arith.constant 1.000000e+00 : f32
    %18 = vector.broadcast %cst_11 : f32 to vector<4x512xf32>
    %19 = arith.addf %18, %17 : vector<4x512xf32>
    %20 = arith.divf %18, %19 : vector<4x512xf32>
    %c0_12 = arith.constant 0 : index
    %c0_13 = arith.constant 0 : index
    %21 = vector.load %arg6[%c0_12, %c0_13] : memref<1x4xf32, #tpu.memory_space<vmem>>, vector<1x4xf32>
    %cst_14 = arith.constant dense<0.000000e+00> : vector<1x512xf32>
    %22 = tpu.matmul %21, %20, %cst_14 {dimension_numbers = #tpu.dot_dimension_numbers<[1], [0], [0], [1], [0, 0, 1, 1], [], []>} : vector<1x4xf32>, vector<4x512xf32>, vector<1x512xf32> -> vector<1x512xf32>
    %c0_15 = arith.constant 0 : index
    %c0_16 = arith.constant 0 : index
    %23 = vector.load %arg7[%c0_15, %c0_16] : memref<1x1xf32, #tpu.memory_space<vmem>>, vector<1x1xf32>
    %24 = vector.broadcast %23 : vector<1x1xf32> to vector<1x512xf32>
    %25 = arith.addf %22, %24 : vector<1x512xf32>
    %26 = arith.negf %25 : vector<1x512xf32>
    %27 = math.exp %26 : vector<1x512xf32>
    %cst_17 = arith.constant 1.000000e+00 : f32
    %28 = vector.broadcast %cst_17 : f32 to vector<1x512xf32>
    %29 = arith.addf %28, %27 : vector<1x512xf32>
    %30 = arith.divf %28, %29 : vector<1x512xf32>
    %c0_18 = arith.constant 0 : index
    %c0_19 = arith.constant 0 : index
    %31 = vector.load %arg8[%c0_18, %c0_19] : memref<1x512xf32, #tpu.memory_space<vmem>>, vector<1x512xf32>
    tpu.vector_store %arg8[%c0_18, %c0_19], %30 {strides = array<i32>} : memref<1x512xf32, #tpu.memory_space<vmem>>, vector<1x512xf32>,
    return
  }
  func.func @transform_0(%arg0: i32) -> (i32, i32) {
    %c0_i32 = arith.constant 0 : i32
    %c0_i32_0 = arith.constant 0 : i32
    return %c0_i32, %arg0 : i32, i32
  }
  func.func @transform_1(%arg0: i32) -> (i32, i32) {
    %c0_i32 = arith.constant 0 : i32
    %c0_i32_0 = arith.constant 0 : i32
    %c0_i32_1 = arith.constant 0 : i32
    return %c0_i32, %c0_i32_0 : i32, i32
  }
  func.func @transform_2(%arg0: i32) -> (i32, i32) {
    %c0_i32 = arith.constant 0 : i32
    %c0_i32_0 = arith.constant 0 : i32
    %c0_i32_1 = arith.constant 0 : i32
    return %c0_i32, %c0_i32_0 : i32, i32
  }
  func.func @transform_3(%arg0: i32) -> (i32, i32) {
    %c0_i32 = arith.constant 0 : i32
    %c0_i32_0 = arith.constant 0 : i32
    %c0_i32_1 = arith.constant 0 : i32
    return %c0_i32, %c0_i32_0 : i32, i32
  }
  func.func @transform_4(%arg0: i32) -> (i32, i32) {
    %c0_i32 = arith.constant 0 : i32
    %c0_i32_0 = arith.constant 0 : i32
    %c0_i32_1 = arith.constant 0 : i32
    return %c0_i32, %c0_i32_0 : i32, i32
  }
  func.func @transform_5(%arg0: i32) -> (i32, i32) {
    %c0_i32 = arith.constant 0 : i32
    %c0_i32_0 = arith.constant 0 : i32
    %c0_i32_1 = arith.constant 0 : i32
    return %c0_i32, %c0_i32_0 : i32, i32
  }
  func.func @transform_6(%arg0: i32) -> (i32, i32) {
    %c0_i32 = arith.constant 0 : i32
    %c0_i32_0 = arith.constant 0 : i32
    %c0_i32_1 = arith.constant 0 : i32
    return %c0_i32, %c0_i32_0 : i32, i32
  }
  func.func @transform_7(%arg0: i32) -> (i32, i32) {
    %c0_i32 = arith.constant 0 : i32
    %c0_i32_0 = arith.constant 0 : i32
    return %c0_i32, %arg0 : i32, i32
  }
}

</mosaic_0001>

<llo_original>
// kernel: tpu_custom_call.1
$region0: #{tpu_custom_call.1}
  #allocation0 [shape = 'u32[]', space=smem, size = 0x4, offset = 0x4, fixed_abs, tag = 'smem constant byte address 0x4 - core index']
  #allocation1 [shape = 'u32[144,128]{1,0:T(1,128)}', space=vmem, size = 0x12000, scoped, tag = 'internal scratch']
  #allocation2 [shape = 'f32[1,1]{1,0:T(1,128)S(1)}', space=vmem, size = 0x200, scoped, tag = 'scoped memory for tpu_custom_call.1']
  %s0 = inlined_call_operand.hbm [shape: f32[8,1024], index: 0, kind: input, shape index: {}]
  %s1 = inlined_call_operand.vmem [shape: f32[6,8], index: 1, kind: input, shape index: {}]
  %s2 = inlined_call_operand.vmem [shape: f32[6,1], index: 2, kind: input, shape index: {}]
  %s3 = inlined_call_operand.vmem [shape: f32[4,6], index: 3, kind: input, shape index: {}]
  %s4 = inlined_call_operand.vmem [shape: f32[4,1], index: 4, kind: input, shape index: {}]
  %s5 = inlined_call_operand.vmem [shape: f32[1,4], index: 5, kind: input, shape index: {}]
  %s6 = inlined_call_operand.<no memory space> [shape: f32[1,1], index: 6, kind: input, shape index: {}]
  %s7 = inlined_call_operand.hbm [shape: f32[1,1024], index: 7, kind: output, shape index: {}]
  %s8 = sld [smem:[#allocation0]]
  $region65: #{tpu_custom_call.1} parent=0
    _
  %s10 = ssub.s32 1, %s8
  %s11 = scalar_select 0, %s10, %s8
  %v12 = vstv %s6
  %13 = vst [vmem:[#allocation2] sm:$0x1] %v12
  $region1: #{tpu_custom_call.1} parent=0
    #allocation3 [shape = 'u8[32768]{0}', space=vmem, size = 0x8000, scoped, tag = 'input window, operand 0']
    #allocation4 [shape = 's32[2]{0}', space=sflag, size = 0x8, scoped, tag = 'scoped memory for tpu_custom_call.1']
    #allocation5 [shape = 's32[2]{0}', space=sflag, size = 0x8, scoped, tag = 'scoped memory for tpu_custom_call.1']
    #allocation6 [shape = 'u8[4096]{0}', space=vmem, size = 0x1000, scoped, tag = 'output window, operand 0']
    %14 = vsyncpa [#allocation4], 0
    %s15 = scalar_lea.sflag [#allocation4], 1
    %16 = vsyncpa %s15, 0
    %17 = vsyncpa [#allocation5], 0
    %s18 = scalar_lea.sflag [#allocation5], 1
    %19 = vsyncpa %s18, 0
    loop: start=0, step=1, limit=4
    $region2: #{tpu_custom_call.1} parent=1 // loop_pre_header
      _
    $region3: #{tpu_custom_call.1} parent=1 // loop_header
      %s21 = sphi 0, %s25
      %p22 = scmp.ge.s32.totalorder %s21, 4
      %s31 = sphi 0, %s33
      %s34 = sphi 0, %s31
      %s35 = sphi 0, %s34
      %s51 = sphi 0, %s35
      %s55 = sphi 0, %s55
      %s57 = sphi 0, %s55
      %s58 = sphi 0, %s57
      %s72 = sphi 0, %s58
      %s76 = sphi 0, %s76
      %s78 = sphi 0, %s76
      %s79 = sphi 0, %s78
      %s93 = sphi 0, %s79
      %s97 = sphi 0, %s97
      %s99 = sphi 0, %s97
      %s100 = sphi 0, %s99
      %s114 = sphi 0, %s100
      %s118 = sphi 0, %s118
      %s120 = sphi 0, %s118
      %s121 = sphi 0, %s120
      %s135 = sphi 0, %s121
      %s139 = sphi 0, %s139
      %s141 = sphi 0, %s139
      %s142 = sphi 0, %s141
      %s156 = sphi 0, %s142
      %s160 = sphi 0, %s160
      %s162 = sphi 0, %s160
      %s163 = sphi 0, %s162
      %s177 = sphi 0, %s163
      %s183 = sphi 0, %s185
      %s186 = sphi 0, %s183
      %s187 = sphi 0, %s186
      %s203 = sphi 0, %s187
    $region4: #{tpu_custom_call.1} parent=1 // loop_header_branch
      %24 = sbr.rel (%p22) target = $region8
    $region5: #{tpu_custom_call.1} parent=1 // loop_body
      %s26 = ssub.s32 %s21, 1
      %s27 = ssub.s32 %s21, 2
      %s28 = sadd.s32 %s21, 1
      %s29 = ssub.s32 %s21, %s28
      %p30 = scmp.eq.s32.totalorder %s29, 0
      %s32 = sadd.s32 %s31, 1
      %s33 = scalar_select %p30, %s31, %s32
      %p36 = pneg %p30
      %p37 = scmp.eq.s32.totalorder %s21, 1
      %p38 = por %p36, %p37
      %p39 = scmp.ne.s32.totalorder %s31, %s34
      %p40 = scmp.eq.s32.totalorder %s21, 0
      %p41 = por %p39, %p40
      %p42 = scmp.ne.s32.totalorder %s31, %s34
      %p43 = scmp.eq.s32.totalorder %s26, 1
      %p44 = por %p42, %p43
      %p45 = scmp.ne.s32.totalorder %s34, %s35
      %p46 = scmp.eq.s32.totalorder %s26, 0
      %p47 = por %p45, %p46
      %p48 = scmp.ne.s32.totalorder %s34, %s35
      %p49 = scmp.eq.s32.totalorder %s27, 1
      %p50 = por %p48, %p49
      %p52 = scmp.ne.s32.totalorder %s35, %s51
      %p53 = scmp.eq.s32.totalorder %s27, 0
      %p54 = por %p52, %p53
      %s56 = sadd.s32 %s55, 1
      %p59 = scmp.eq.s32.totalorder %s21, 1
      %p60 = scmp.ne.s32.totalorder %s55, %s57
      %p61 = scmp.eq.s32.totalorder %s21, 0
      %p62 = por %p60, %p61
      %p63 = scmp.ne.s32.totalorder %s55, %s57
      %p64 = scmp.eq.s32.totalorder %s26, 1
      %p65 = por %p63, %p64
      %p66 = scmp.ne.s32.totalorder %s57, %s58
      %p67 = scmp.eq.s32.totalorder %s26, 0
      %p68 = por %p66, %p67
      %p69 = scmp.ne.s32.totalorder %s57, %s58
      %p70 = scmp.eq.s32.totalorder %s27, 1
      %p71 = por %p69, %p70
      %p73 = scmp.ne.s32.totalorder %s58, %s72
      %p74 = scmp.eq.s32.totalorder %s27, 0
      %p75 = por %p73, %p74
      %s77 = sadd.s32 %s76, 1
      %p80 = scmp.eq.s32.totalorder %s21, 1
      %p81 = scmp.ne.s32.totalorder %s76, %s78
      %p82 = scmp.eq.s32.totalorder %s21, 0
      %p83 = por %p81, %p82
      %p84 = scmp.ne.s32.totalorder %s76, %s78
      %p85 = scmp.eq.s32.totalorder %s26, 1
      %p86 = por %p84, %p85
      %p87 = scmp.ne.s32.totalorder %s78, %s79
      %p88 = scmp.eq.s32.totalorder %s26, 0
      %p89 = por %p87, %p88
      %p90 = scmp.ne.s32.totalorder %s78, %s79
      %p91 = scmp.eq.s32.totalorder %s27, 1
      %p92 = por %p90, %p91
      %p94 = scmp.ne.s32.totalorder %s79, %s93
      %p95 = scmp.eq.s32.totalorder %s27, 0
      %p96 = por %p94, %p95
      %s98 = sadd.s32 %s97, 1
      %p101 = scmp.eq.s32.totalorder %s21, 1
      %p102 = scmp.ne.s32.totalorder %s97, %s99
      %p103 = scmp.eq.s32.totalorder %s21, 0
      %p104 = por %p102, %p103
      %p105 = scmp.ne.s32.totalorder %s97, %s99
      %p106 = scmp.eq.s32.totalorder %s26, 1
      %p107 = por %p105, %p106
      %p108 = scmp.ne.s32.totalorder %s99, %s100
      %p109 = scmp.eq.s32.totalorder %s26, 0
      %p110 = por %p108, %p109
      %p111 = scmp.ne.s32.totalorder %s99, %s100
      %p112 = scmp.eq.s32.totalorder %s27, 1
      %p113 = por %p111, %p112
      %p115 = scmp.ne.s32.totalorder %s100, %s114
      %p116 = scmp.eq.s32.totalorder %s27, 0
      %p117 = por %p115, %p116
      %s119 = sadd.s32 %s118, 1
      %p122 = scmp.eq.s32.totalorder %s21, 1
      %p123 = scmp.ne.s32.totalorder %s118, %s120
      %p124 = scmp.eq.s32.totalorder %s21, 0
      %p125 = por %p123, %p124
      %p126 = scmp.ne.s32.totalorder %s118, %s120
      %p127 = scmp.eq.s32.totalorder %s26, 1
      %p128 = por %p126, %p127
      %p129 = scmp.ne.s32.totalorder %s120, %s121
      %p130 = scmp.eq.s32.totalorder %s26, 0
      %p131 = por %p129, %p130
      %p132 = scmp.ne.s32.totalorder %s120, %s121
      %p133 = scmp.eq.s32.totalorder %s27, 1
      %p134 = por %p132, %p133
      %p136 = scmp.ne.s32.totalorder %s121, %s135
      %p137 = scmp.eq.s32.totalorder %s27, 0
      %p138 = por %p136, %p137
      %s140 = sadd.s32 %s139, 1
      %p143 = scmp.eq.s32.totalorder %s21, 1
      %p144 = scmp.ne.s32.totalorder %s139, %s141
      %p145 = scmp.eq.s32.totalorder %s21, 0
      %p146 = por %p144, %p145
      %p147 = scmp.ne.s32.totalorder %s139, %s141
      %p148 = scmp.eq.s32.totalorder %s26, 1
      %p149 = por %p147, %p148
      %p150 = scmp.ne.s32.totalorder %s141, %s142
      %p151 = scmp.eq.s32.totalorder %s26, 0
      %p152 = por %p150, %p151
      %p153 = scmp.ne.s32.totalorder %s141, %s142
      %p154 = scmp.eq.s32.totalorder %s27, 1
      %p155 = por %p153, %p154
      %p157 = scmp.ne.s32.totalorder %s142, %s156
      %p158 = scmp.eq.s32.totalorder %s27, 0
      %p159 = por %p157, %p158
      %s161 = sadd.s32 %s160, 1
      %p164 = scmp.eq.s32.totalorder %s21, 1
      %p165 = scmp.ne.s32.totalorder %s160, %s162
      %p166 = scmp.eq.s32.totalorder %s21, 0
      %p167 = por %p165, %p166
      %p168 = scmp.ne.s32.totalorder %s160, %s162
      %p169 = scmp.eq.s32.totalorder %s26, 1
      %p170 = por %p168, %p169
      %p171 = scmp.ne.s32.totalorder %s162, %s163
      %p172 = scmp.eq.s32.totalorder %s26, 0
      %p173 = por %p171, %p172
      %p174 = scmp.ne.s32.totalorder %s162, %s163
      %p175 = scmp.eq.s32.totalorder %s27, 1
      %p176 = por %p174, %p175
      %p178 = scmp.ne.s32.totalorder %s163, %s177
      %p179 = scmp.eq.s32.totalorder %s27, 0
      %p180 = por %p178, %p179
      %s181 = ssub.s32 %s21, %s28
      %p182 = scmp.eq.s32.totalorder %s181, 0
      %s184 = sadd.s32 %s183, 1
      %s185 = scalar_select %p182, %s183, %s184
      %p188 = pneg %p182
      %p189 = scmp.eq.s32.totalorder %s21, 1
      %p190 = por %p188, %p189
      %p191 = scmp.ne.s32.totalorder %s183, %s186
      %p192 = scmp.eq.s32.totalorder %s21, 0
      %p193 = por %p191, %p192
      %p194 = scmp.ne.s32.totalorder %s183, %s186
      %p195 = scmp.eq.s32.totalorder %s26, 1
      %p196 = por %p194, %p195
      %p197 = scmp.ne.s32.totalorder %s186, %s187
      %p198 = scmp.eq.s32.totalorder %s26, 0
      %p199 = por %p197, %p198
      %p200 = scmp.ne.s32.totalorder %s186, %s187
      %p201 = scmp.eq.s32.totalorder %s27, 1
      %p202 = por %p200, %p201
      %p204 = scmp.ne.s32.totalorder %s187, %s203
      %p205 = scmp.eq.s32.totalorder %s27, 0
      %p206 = por %p204, %p205
      %p207 = scmp.le.s32.totalorder 1, %s21
      %p208 = scmp.lt.s32.totalorder %s21, 3
      %p209 = pnand %p207, %p208
      %p210 = pneg %p209
      // Predicated region
      $region9: #{tpu_custom_call.1} parent=5 // pred_check
        _
      $region10: #{tpu_custom_call.1} parent=5 // pred_check_branch
        %212 = sbr.rel (%p209) target = $region12
      $region11: #{tpu_custom_call.1} parent=5 // pred_region
        %s213 = ssub.s32 %s21, 1
        // Predicated region
        $region13: #{tpu_custom_call.1} parent=11 // pred_check
          %p214 = pneg %p68
        $region14: #{tpu_custom_call.1} parent=11 // pred_check_branch
          %216 = sbr.rel (%p214) target = $region16
        $region15: #{tpu_custom_call.1} parent=11 // pred_region
          _
        $region16: #{tpu_custom_call.1} parent=11 // pred_fallthru
          _
        // Predicated region
        $region17: #{tpu_custom_call.1} parent=11 // pred_check
          %p217 = pneg %p89
        $region18: #{tpu_custom_call.1} parent=11 // pred_check_branch
          %219 = sbr.rel (%p217) target = $region20
        $region19: #{tpu_custom_call.1} parent=11 // pred_region
          _
        $region20: #{tpu_custom_call.1} parent=11 // pred_fallthru
          _
        // Predicated region
        $region21: #{tpu_custom_call.1} parent=11 // pred_check
          %p220 = pneg %p110
        $region22: #{tpu_custom_call.1} parent=11 // pred_check_branch
          %222 = sbr.rel (%p220) target = $region24
        $region23: #{tpu_custom_call.1} parent=11 // pred_region
          _
        $region24: #{tpu_custom_call.1} parent=11 // pred_fallthru
          _
        // Predicated region
        $region25: #{tpu_custom_call.1} parent=11 // pred_check
          %p223 = pneg %p131
        $region26: #{tpu_custom_call.1} parent=11 // pred_check_branch
          %225 = sbr.rel (%p223) target = $region28
        $region27: #{tpu_custom_call.1} parent=11 // pred_region
          _
        $region28: #{tpu_custom_call.1} parent=11 // pred_fallthru
          _
        // Predicated region
        $region29: #{tpu_custom_call.1} parent=11 // pred_check
          %p226 = pneg %p152
        $region30: #{tpu_custom_call.1} parent=11 // pred_check_branch
          %228 = sbr.rel (%p226) target = $region32
        $region31: #{tpu_custom_call.1} parent=11 // pred_region
          _
        $region32: #{tpu_custom_call.1} parent=11 // pred_fallthru
          _
        // Predicated region
        $region33: #{tpu_custom_call.1} parent=11 // pred_check
          %p229 = pneg %p173
        $region34: #{tpu_custom_call.1} parent=11 // pred_check_branch
          %231 = sbr.rel (%p229) target = $region36
        $region35: #{tpu_custom_call.1} parent=11 // pred_region
          _
        $region36: #{tpu_custom_call.1} parent=11 // pred_fallthru
          _
      $region12: #{tpu_custom_call.1} parent=5 // pred_fallthru
        _
      %p232 = scmp.lt.s32.totalorder %s21, 2
      // Predicated region
      $region37: #{tpu_custom_call.1} parent=5 // pred_check
        %p233 = pneg %p232
      $region38: #{tpu_custom_call.1} parent=5 // pred_check_branch
        %235 = sbr.rel (%p233) target = $region40
      $region39: #{tpu_custom_call.1} parent=5 // pred_region
        // Predicated region
        $region41: #{tpu_custom_call.1} parent=39 // pred_check
          %p236 = pneg %p41
        $region42: #{tpu_custom_call.1} parent=39 // pred_check_branch
          %238 = sbr.rel (%p236) target = $region44
        $region43: #{tpu_custom_call.1} parent=39 // pred_region
          %s239 = sand.u32 %s31, 1
          %s240 = scalar_lea.sflag [#allocation4], %s239
          %s241 = sand.u32 %s31, 1
          %s242 = smul.addr %s241, 32
          %s243 = scalar_lea.vmem [#allocation3], %s242
          %s244 = smul.u32 4, %s21
          %s246 = ssub.s32 512, 512
          %247 = vsyncadd %s240, %s246
          %s248 = smul.addr %s244, 128
          %s249 = scalar_lea.hbm %s0, %s248
          %s251 = sshll.u32 %s243, 4
          %s252 = int_to_ptr.vmem [resolvable:$true] %s251
          %254 = dma.hbm_to_vmem [thread:$0]  %s249, 512, %s252, %s240
        $region44: #{tpu_custom_call.1} parent=39 // pred_fallthru
          _
      $region40: #{tpu_custom_call.1} parent=5 // pred_fallthru
        _
      %p255 = scmp.le.s32.totalorder 1, %s21
      %p256 = scmp.lt.s32.totalorder %s21, 3
      %p257 = pnand %p255, %p256
      %p258 = pneg %p257
      // Predicated region
      $region45: #{tpu_custom_call.1} parent=5 // pred_check
        _
      $region46: #{tpu_custom_call.1} parent=5 // pred_check_branch
        %260 = sbr.rel (%p257) target = $region48
      $region47: #{tpu_custom_call.1} parent=5 // pred_region
        %s261 = ssub.s32 %s21, 1
        %s262 = sand.u32 %s34, 1
        %s263 = scalar_lea.sflag [#allocation4], %s262
        %s264 = sand.u32 %s34, 1
        %s265 = smul.addr %s264, 32
        %s266 = scalar_lea.vmem [#allocation3], %s265
        // Predicated region
        $region49: #{tpu_custom_call.1} parent=47 // pred_check
          %p267 = pneg %p47
        $region50: #{tpu_custom_call.1} parent=47 // pred_check_branch
          %269 = sbr.rel (%p267) target = $region52
        $region51: #{tpu_custom_call.1} parent=47 // pred_region
          %270 = dma.done %s263, 512
        $region52: #{tpu_custom_call.1} parent=47 // pred_fallthru
          _
        %s271 = sand.u32 %s34, 1
        %s272 = scalar_lea.sflag [#allocation4], %s271
        %s273 = sand.u32 %s34, 1
        %s274 = smul.addr %s273, 32
        %s275 = scalar_lea.vmem [#allocation3], %s274
        %p276 = pneg %p47
        %p277 = pneg %p44
        %p278 = pneg %p68
        %p279 = pneg %p65
        %p280 = pneg %p89
        %p281 = pneg %p86
        %p282 = pneg %p110
        %p283 = pneg %p107
        %p284 = pneg %p131
        %p285 = pneg %p128
        %p286 = pneg %p152
        %p287 = pneg %p149
        %p288 = pneg %p173
        %p289 = pneg %p170
        %p290 = pneg %p199
        %p291 = pneg %p196
        %s292 = sand.u32 %s186, 1
        %s293 = scalar_lea.sflag [#allocation5], %s292
        %s294 = sand.u32 %s186, 1
        %s295 = smul.addr %s294, 4
        %s296 = scalar_lea.vmem [#allocation6], %s295
        %s297 = smul.u32 4, %s26
        %s298 = smul.u32 4, %s26
        %v299 = vld [vmem:[%s266] sm:$0xff]
        %v300 = vld [vmem:[%s266 + $0x8] sm:$0xff]
        %v301 = vld [vmem:[%s266 + $0x10] sm:$0xff]
        %v302 = vld [vmem:[%s266 + $0x18] sm:$0xff]
        %v303 = vld [vmem:[%s1] sm:$0x3f]
        %v304 = vld [vmem:[%s2] sm:$0x3f]
        %306 = vset.pattern.permute.xlu0 0
        %307 = vperm.xlu0 %306, %v304
        %v308 = vpop.permute.xlu0 %307
        %vm310 = vcmask 64512
        %v312 = vsel %vm310, %v303, 0
        %314 = vmatprep.subr.mxu0 0.0
        %315 = vmatpush1.msra.mxu0 0.0
        %316 = vmatprep.subr.mxu0 0.0
        %317 = vmatpush1.msra.mxu0 0.0
        %318 = vmatprep.subr.mxu0 0.0
        %319 = vmatpush1.msra.mxu0 0.0
        %320 = vmatprep.subr.mxu0 0.0
        %321 = vmatpush1.msra.mxu0 0.0
        %322 = vmatprep.subr.mxu0 0.0
        %323 = vmatpush1.msra.mxu0 0.0
        %324 = vmatprep.subr.mxu0 0.0
        %325 = vmatpush1.msra.mxu0 0.0
        %326 = vmatprep.subr.mxu0 0.0
        %327 = vmatpush1.msra.mxu0 0.0
        %328 = vmatprep.subr.mxu0 0.0
        %329 = vmatpush1.msra.mxu0 0.0
        %330 = vmatprep.subr.mxu0 0.0
        %331 = vmatpush1.msra.mxu0 0.0
        %332 = vmatprep.subr.mxu0 0.0
        %333 = vmatpush1.msra.mxu0 0.0
        %334 = vmatprep.subr.mxu0 0.0
        %335 = vmatpush1.msra.mxu0 0.0
        %336 = vmatprep.subr.mxu0 0.0
        %337 = vmatpush1.msra.mxu0 0.0
        %338 = vmatprep.subr.mxu0 0.0
        %339 = vmatpush1.msra.mxu0 0.0
        %340 = vmatprep.subr.mxu0 0.0
        %341 = vmatpush1.msra.mxu0 0.0
        %342 = vmatprep.subr.mxu0 0.0
        %343 = vmatpush1.msra.mxu0 0.0
        %344 = vmatprep.subr.mxu0 %v300
        %345 = vmatpush1.msra.mxu0 %v299
        %346 = vmatprep.subr.mxu0 0.0
        %347 = vmatpush2.msra.mxu0 0.0
        %348 = vmatprep.subr.mxu0 0.0
        %349 = vmatpush2.msra.mxu0 0.0
        %350 = vmatprep.subr.mxu0 0.0
        %351 = vmatpush2.msra.mxu0 0.0
        %352 = vmatprep.subr.mxu0 0.0
        %353 = vmatpush2.msra.mxu0 0.0
        %354 = vmatprep.subr.mxu0 0.0
        %355 = vmatpush2.msra.mxu0 0.0
        %356 = vmatprep.subr.mxu0 0.0
        %357 = vmatpush2.msra.mxu0 0.0
        %358 = vmatprep.subr.mxu0 0.0
        %359 = vmatpush2.msra.mxu0 0.0
        %360 = vmatprep.subr.mxu0 0.0
        %361 = vmatpush2.msra.mxu0 0.0
        %362 = vmatprep.subr.mxu0 0.0
        %363 = vmatpush2.msra.mxu0 0.0
        %364 = vmatprep.subr.mxu0 0.0
        %365 = vmatpush2.msra.mxu0 0.0
        %366 = vmatprep.subr.mxu0 0.0
        %367 = vmatpush2.msra.mxu0 0.0
        %368 = vmatprep.subr.mxu0 0.0
        %369 = vmatpush2.msra.mxu0 0.0
        %370 = vmatprep.subr.mxu0 0.0
        %371 = vmatpush2.msra.mxu0 0.0
        %372 = vmatprep.subr.mxu0 0.0
        %373 = vmatpush2.msra.mxu0 0.0
        %374 = vmatprep.subr.mxu0 0.0
        %375 = vmatpush2.msra.mxu0 0.0
        %376 = vmatprep.subr.mxu0 0.0
        %377 = vmatpush2.msra.mxu0 0.0
        %378 = vmatprep.mubr.f32.mxu0 0.0
        %379 = vmatmul.mubr.f32.gmra.mxu0 %v312
        %v380 = vpop.f32.mrf.mxu0
        %v381 = vadd.f32 %v308, %v380
        %v382 = vpop.f32.mrf.mxu0
        %v383 = vadd.f32 %v308, %v382
        %384 = vdwg.mxu0
        %385 = vmatprep.subr.mxu0 0.0
        %386 = vmatpush1.msra.mxu0 0.0
        %387 = vmatprep.subr.mxu0 0.0
        %388 = vmatpush1.msra.mxu0 0.0
        %389 = vmatprep.subr.mxu0 0.0
        %390 = vmatpush1.msra.mxu0 0.0
        %391 = vmatprep.subr.mxu0 0.0
        %392 = vmatpush1.msra.mxu0 0.0
        %393 = vmatprep.subr.mxu0 0.0
        %394 = vmatpush1.msra.mxu0 0.0
        %395 = vmatprep.subr.mxu0 0.0
        %396 = vmatpush1.msra.mxu0 0.0
        %397 = vmatprep.subr.mxu0 0.0
        %398 = vmatpush1.msra.mxu0 0.0
        %399 = vmatprep.subr.mxu0 0.0
        %400 = vmatpush1.msra.mxu0 0.0
        %401 = vmatprep.subr.mxu0 0.0
        %402 = vmatpush1.msra.mxu0 0.0
        %403 = vmatprep.subr.mxu0 0.0
        %404 = vmatpush1.msra.mxu0 0.0
        %405 = vmatprep.subr.mxu0 0.0
        %406 = vmatpush1.msra.mxu0 0.0
        %407 = vmatprep.subr.mxu0 0.0
        %408 = vmatpush1.msra.mxu0 0.0
        %409 = vmatprep.subr.mxu0 0.0
        %410 = vmatpush1.msra.mxu0 0.0
        %411 = vmatprep.subr.mxu0 0.0
        %412 = vmatpush1.msra.mxu0 0.0
        %413 = vmatprep.subr.mxu0 0.0
        %414 = vmatpush1.msra.mxu0 0.0
        %415 = vmatprep.subr.mxu0 %v302
        %416 = vmatpush1.msra.mxu0 %v301
        %417 = vmatprep.subr.mxu0 0.0
        %418 = vmatpush2.msra.mxu0 0.0
        %419 = vmatprep.subr.mxu0 0.0
        %420 = vmatpush2.msra.mxu0 0.0
        %421 = vmatprep.subr.mxu0 0.0
        %422 = vmatpush2.msra.mxu0 0.0
        %423 = vmatprep.subr.mxu0 0.0
        %424 = vmatpush2.msra.mxu0 0.0
        %425 = vmatprep.subr.mxu0 0.0
        %426 = vmatpush2.msra.mxu0 0.0
        %427 = vmatprep.subr.mxu0 0.0
        %428 = vmatpush2.msra.mxu0 0.0
        %429 = vmatprep.subr.mxu0 0.0
        %430 = vmatpush2.msra.mxu0 0.0
        %431 = vmatprep.subr.mxu0 0.0
        %432 = vmatpush2.msra.mxu0 0.0
        %433 = vmatprep.subr.mxu0 0.0
        %434 = vmatpush2.msra.mxu0 0.0
        %435 = vmatprep.subr.mxu0 0.0
        %436 = vmatpush2.msra.mxu0 0.0
        %437 = vmatprep.subr.mxu0 0.0
        %438 = vmatpush2.msra.mxu0 0.0
        %439 = vmatprep.subr.mxu0 0.0
        %440 = vmatpush2.msra.mxu0 0.0
        %441 = vmatprep.subr.mxu0 0.0
        %442 = vmatpush2.msra.mxu0 0.0
        %443 = vmatprep.subr.mxu0 0.0
        %444 = vmatpush2.msra.mxu0 0.0
        %445 = vmatprep.subr.mxu0 0.0
        %446 = vmatpush2.msra.mxu0 0.0
        %447 = vmatprep.subr.mxu0 0.0
        %448 = vmatpush2.msra.mxu0 0.0
        %449 = vmatprep.mubr.f32.mxu0 0.0
        %450 = vmatmul.mubr.f32.gmra.mxu0 %v312
        %v451 = vpop.f32.mrf.mxu0
        %v452 = vadd.f32 %v308, %v451
        %v453 = vpop.f32.mrf.mxu0
        %v454 = vadd.f32 %v308, %v453
        %455 = vdwg.mxu0
        %v456 = vxor.u32 %v381, 2147483648
        %v457 = vxor.u32 %v383, 2147483648
        %v458 = vxor.u32 %v452, 2147483648
        %v459 = vxor.u32 %v454, 2147483648
        %v460 = vmul.f32 %v456, 1.442695
        %v461 = vpow.pop %v460
        %v462 = vmul.f32 %v457, 1.442695
        %v463 = vpow.pop %v462
        %v464 = vmul.f32 %v458, 1.442695
        %v465 = vpow.pop %v464
        %v466 = vmul.f32 %v459, 1.442695
        %v467 = vpow.pop %v466
        %v468 = vadd.f32 %v461, 1.0
        %v469 = vadd.f32 %v463, 1.0
        %v470 = vadd.f32 %v465, 1.0
        %v471 = vadd.f32 %v467, 1.0
        %v472 = vrcp.pop %v468
        %v473 = vmul.f32 1.0, %v472
        %v474 = vrcp.pop %v469
        %v475 = vmul.f32 1.0, %v474
        %v476 = vrcp.pop %v470
        %v477 = vmul.f32 1.0, %v476
        %v478 = vrcp.pop %v471
        %v479 = vmul.f32 1.0, %v478
        %v480 = vld [vmem:[%s3] sm:$0xf]
        %v481 = vld [vmem:[%s4] sm:$0xf]
        %483 = vset.pattern.permute.xlu0 0
        %484 = vperm.xlu0 %483, %v481
        %v485 = vpop.permute.xlu0 %484
        %vm487 = vcmask 48128
        %v489 = vsel %vm487, %v480, 0
        %vm491 = vcmask 1045504
        %v493 = vsel %vm491, %v473, 0
        %v496 = vsel %vm491, %v475, 0
        %v499 = vsel %vm491, %v477, 0
        %v502 = vsel %vm491, %v479, 0
        %504 = vmatprep.subr.mxu0 0.0
        %505 = vmatpush1.msra.mxu0 0.0
        %506 = vmatprep.subr.mxu0 0.0
        %507 = vmatpush1.msra.mxu0 0.0
        %508 = vmatprep.subr.mxu0 0.0
        %509 = vmatpush1.msra.mxu0 0.0
        %510 = vmatprep.subr.mxu0 0.0
        %511 = vmatpush1.msra.mxu0 0.0
        %512 = vmatprep.subr.mxu0 0.0
        %513 = vmatpush1.msra.mxu0 0.0
        %514 = vmatprep.subr.mxu0 0.0
        %515 = vmatpush1.msra.mxu0 0.0
        %516 = vmatprep.subr.mxu0 0.0
        %517 = vmatpush1.msra.mxu0 0.0
        %518 = vmatprep.subr.mxu0 0.0
        %519 = vmatpush1.msra.mxu0 0.0
        %520 = vmatprep.subr.mxu0 0.0
        %521 = vmatpush1.msra.mxu0 0.0
        %522 = vmatprep.subr.mxu0 0.0
        %523 = vmatpush1.msra.mxu0 0.0
        %524 = vmatprep.subr.mxu0 0.0
        %525 = vmatpush1.msra.mxu0 0.0
        %526 = vmatprep.subr.mxu0 0.0
        %527 = vmatpush1.msra.mxu0 0.0
        %528 = vmatprep.subr.mxu0 0.0
        %529 = vmatpush1.msra.mxu0 0.0
        %530 = vmatprep.subr.mxu0 0.0
        %531 = vmatpush1.msra.mxu0 0.0
        %532 = vmatprep.subr.mxu0 0.0
        %533 = vmatpush1.msra.mxu0 0.0
        %534 = vmatprep.subr.mxu0 %v496
        %535 = vmatpush1.msra.mxu0 %v493
        %536 = vmatprep.subr.mxu0 0.0
        %537 = vmatpush2.msra.mxu0 0.0
        %538 = vmatprep.subr.mxu0 0.0
        %539 = vmatpush2.msra.mxu0 0.0
        %540 = vmatprep.subr.mxu0 0.0
        %541 = vmatpush2.msra.mxu0 0.0
        %542 = vmatprep.subr.mxu0 0.0
        %543 = vmatpush2.msra.mxu0 0.0
        %544 = vmatprep.subr.mxu0 0.0
        %545 = vmatpush2.msra.mxu0 0.0
        %546 = vmatprep.subr.mxu0 0.0
        %547 = vmatpush2.msra.mxu0 0.0
        %548 = vmatprep.subr.mxu0 0.0
        %549 = vmatpush2.msra.mxu0 0.0
        %550 = vmatprep.subr.mxu0 0.0
        %551 = vmatpush2.msra.mxu0 0.0
        %552 = vmatprep.subr.mxu0 0.0
        %553 = vmatpush2.msra.mxu0 0.0
        %554 = vmatprep.subr.mxu0 0.0
        %555 = vmatpush2.msra.mxu0 0.0
        %556 = vmatprep.subr.mxu0 0.0
        %557 = vmatpush2.msra.mxu0 0.0
        %558 = vmatprep.subr.mxu0 0.0
        %559 = vmatpush2.msra.mxu0 0.0
        %560 = vmatprep.subr.mxu0 0.0
        %561 = vmatpush2.msra.mxu0 0.0
        %562 = vmatprep.subr.mxu0 0.0
        %563 = vmatpush2.msra.mxu0 0.0
        %564 = vmatprep.subr.mxu0 0.0
        %565 = vmatpush2.msra.mxu0 0.0
        %566 = vmatprep.subr.mxu0 0.0
        %567 = vmatpush2.msra.mxu0 0.0
        %568 = vmatprep.mubr.f32.mxu0 0.0
        %569 = vmatmul.mubr.f32.gmra.mxu0 %v489
        %v570 = vpop.f32.mrf.mxu0
        %v571 = vadd.f32 %v485, %v570
        %v572 = vpop.f32.mrf.mxu0
        %v573 = vadd.f32 %v485, %v572
        %574 = vdwg.mxu0
        %575 = vmatprep.subr.mxu0 0.0
        %576 = vmatpush1.msra.mxu0 0.0
        %577 = vmatprep.subr.mxu0 0.0
        %578 = vmatpush1.msra.mxu0 0.0
        %579 = vmatprep.subr.mxu0 0.0
        %580 = vmatpush1.msra.mxu0 0.0
        %581 = vmatprep.subr.mxu0 0.0
        %582 = vmatpush1.msra.mxu0 0.0
        %583 = vmatprep.subr.mxu0 0.0
        %584 = vmatpush1.msra.mxu0 0.0
        %585 = vmatprep.subr.mxu0 0.0
        %586 = vmatpush1.msra.mxu0 0.0
        %587 = vmatprep.subr.mxu0 0.0
        %588 = vmatpush1.msra.mxu0 0.0
        %589 = vmatprep.subr.mxu0 0.0
        %590 = vmatpush1.msra.mxu0 0.0
        %591 = vmatprep.subr.mxu0 0.0
        %592 = vmatpush1.msra.mxu0 0.0
        %593 = vmatprep.subr.mxu0 0.0
        %594 = vmatpush1.msra.mxu0 0.0
        %595 = vmatprep.subr.mxu0 0.0
        %596 = vmatpush1.msra.mxu0 0.0
        %597 = vmatprep.subr.mxu0 0.0
        %598 = vmatpush1.msra.mxu0 0.0
        %599 = vmatprep.subr.mxu0 0.0
        %600 = vmatpush1.msra.mxu0 0.0
        %601 = vmatprep.subr.mxu0 0.0
        %602 = vmatpush1.msra.mxu0 0.0
        %603 = vmatprep.subr.mxu0 0.0
        %604 = vmatpush1.msra.mxu0 0.0
        %605 = vmatprep.subr.mxu0 %v502
        %606 = vmatpush1.msra.mxu0 %v499
        %607 = vmatprep.subr.mxu0 0.0
        %608 = vmatpush2.msra.mxu0 0.0
        %609 = vmatprep.subr.mxu0 0.0
        %610 = vmatpush2.msra.mxu0 0.0
        %611 = vmatprep.subr.mxu0 0.0
        %612 = vmatpush2.msra.mxu0 0.0
        %613 = vmatprep.subr.mxu0 0.0
        %614 = vmatpush2.msra.mxu0 0.0
        %615 = vmatprep.subr.mxu0 0.0
        %616 = vmatpush2.msra.mxu0 0.0
        %617 = vmatprep.subr.mxu0 0.0
        %618 = vmatpush2.msra.mxu0 0.0
        %619 = vmatprep.subr.mxu0 0.0
        %620 = vmatpush2.msra.mxu0 0.0
        %621 = vmatprep.subr.mxu0 0.0
        %622 = vmatpush2.msra.mxu0 0.0
        %623 = vmatprep.subr.mxu0 0.0
        %624 = vmatpush2.msra.mxu0 0.0
        %625 = vmatprep.subr.mxu0 0.0
        %626 = vmatpush2.msra.mxu0 0.0
        %627 = vmatprep.subr.mxu0 0.0
        %628 = vmatpush2.msra.mxu0 0.0
        %629 = vmatprep.subr.mxu0 0.0
        %630 = vmatpush2.msra.mxu0 0.0
        %631 = vmatprep.subr.mxu0 0.0
        %632 = vmatpush2.msra.mxu0 0.0
        %633 = vmatprep.subr.mxu0 0.0
        %634 = vmatpush2.msra.mxu0 0.0
        %635 = vmatprep.subr.mxu0 0.0
        %636 = vmatpush2.msra.mxu0 0.0
        %637 = vmatprep.subr.mxu0 0.0
        %638 = vmatpush2.msra.mxu0 0.0
        %639 = vmatprep.mubr.f32.mxu0 0.0
        %640 = vmatmul.mubr.f32.gmra.mxu0 %v489
        %v641 = vpop.f32.mrf.mxu0
        %v642 = vadd.f32 %v485, %v641
        %v643 = vpop.f32.mrf.mxu0
        %v644 = vadd.f32 %v485, %v643
        %645 = vdwg.mxu0
        %v646 = vxor.u32 %v571, 2147483648
        %v647 = vxor.u32 %v573, 2147483648
        %v648 = vxor.u32 %v642, 2147483648
        %v649 = vxor.u32 %v644, 2147483648
        %v650 = vmul.f32 %v646, 1.442695
        %v651 = vpow.pop %v650
        %v652 = vmul.f32 %v647, 1.442695
        %v653 = vpow.pop %v652
        %v654 = vmul.f32 %v648, 1.442695
        %v655 = vpow.pop %v654
        %v656 = vmul.f32 %v649, 1.442695
        %v657 = vpow.pop %v656
        %v658 = vadd.f32 %v651, 1.0
        %v659 = vadd.f32 %v653, 1.0
        %v660 = vadd.f32 %v655, 1.0
        %v661 = vadd.f32 %v657, 1.0
        %v662 = vrcp.pop %v658
        %v663 = vmul.f32 1.0, %v662
        %v664 = vrcp.pop %v659
        %v665 = vmul.f32 1.0, %v664
        %v666 = vrcp.pop %v660
        %v667 = vmul.f32 1.0, %v666
        %v668 = vrcp.pop %v661
        %v669 = vmul.f32 1.0, %v668
        %v670 = vld [vmem:[%s5] sm:$0x1]
        %v671 = vld [vmem:[#allocation2] sm:$0x1]
        %673 = vset.pattern.permute.xlu0 0
        %674 = vperm.xlu0 %673, %v671
        %v675 = vpop.permute.xlu0 %674
        %v677 = vlaneseq
        %v678 = vshrl.u32 %v677, 7
        %v679 = vsub.s32 0, %v678
        %v680 = vrot.slane %v675, %v679
        %vm681 = vcmask 31744
        %v683 = vsel %vm681, %v670, 0
        %vm685 = vcmask 1043456
        %v687 = vsel %vm685, %v663, 0
        %v690 = vsel %vm685, %v665, 0
        %v693 = vsel %vm685, %v667, 0
        %v696 = vsel %vm685, %v669, 0
        %698 = vmatprep.subr.mxu0 0.0
        %699 = vmatpush1.msra.mxu0 0.0
        %700 = vmatprep.subr.mxu0 0.0
        %701 = vmatpush1.msra.mxu0 0.0
        %702 = vmatprep.subr.mxu0 0.0
        %703 = vmatpush1.msra.mxu0 0.0
        %704 = vmatprep.subr.mxu0 0.0
        %705 = vmatpush1.msra.mxu0 0.0
        %706 = vmatprep.subr.mxu0 0.0
        %707 = vmatpush1.msra.mxu0 0.0
        %708 = vmatprep.subr.mxu0 0.0
        %709 = vmatpush1.msra.mxu0 0.0
        %710 = vmatprep.subr.mxu0 0.0
        %711 = vmatpush1.msra.mxu0 0.0
        %712 = vmatprep.subr.mxu0 0.0
        %713 = vmatpush1.msra.mxu0 0.0
        %714 = vmatprep.subr.mxu0 0.0
        %715 = vmatpush1.msra.mxu0 0.0
        %716 = vmatprep.subr.mxu0 0.0
        %717 = vmatpush1.msra.mxu0 0.0
        %718 = vmatprep.subr.mxu0 0.0
        %719 = vmatpush1.msra.mxu0 0.0
        %720 = vmatprep.subr.mxu0 0.0
        %721 = vmatpush1.msra.mxu0 0.0
        %722 = vmatprep.subr.mxu0 0.0
        %723 = vmatpush1.msra.mxu0 0.0
        %724 = vmatprep.subr.mxu0 0.0
        %725 = vmatpush1.msra.mxu0 0.0
        %726 = vmatprep.subr.mxu0 0.0
        %727 = vmatpush1.msra.mxu0 0.0
        %728 = vmatprep.subr.mxu0 %v690
        %729 = vmatpush1.msra.mxu0 %v687
        %730 = vmatprep.subr.mxu0 0.0
        %731 = vmatpush2.msra.mxu0 0.0
        %732 = vmatprep.subr.mxu0 0.0
        %733 = vmatpush2.msra.mxu0 0.0
        %734 = vmatprep.subr.mxu0 0.0
        %735 = vmatpush2.msra.mxu0 0.0
        %736 = vmatprep.subr.mxu0 0.0
        %737 = vmatpush2.msra.mxu0 0.0
        %738 = vmatprep.subr.mxu0 0.0
        %739 = vmatpush2.msra.mxu0 0.0
        %740 = vmatprep.subr.mxu0 0.0
        %741 = vmatpush2.msra.mxu0 0.0
        %742 = vmatprep.subr.mxu0 0.0
        %743 = vmatpush2.msra.mxu0 0.0
        %744 = vmatprep.subr.mxu0 0.0
        %745 = vmatpush2.msra.mxu0 0.0
        %746 = vmatprep.subr.mxu0 0.0
        %747 = vmatpush2.msra.mxu0 0.0
        %748 = vmatprep.subr.mxu0 0.0
        %749 = vmatpush2.msra.mxu0 0.0
        %750 = vmatprep.subr.mxu0 0.0
        %751 = vmatpush2.msra.mxu0 0.0
        %752 = vmatprep.subr.mxu0 0.0
        %753 = vmatpush2.msra.mxu0 0.0
        %754 = vmatprep.subr.mxu0 0.0
        %755 = vmatpush2.msra.mxu0 0.0
        %756 = vmatprep.subr.mxu0 0.0
        %757 = vmatpush2.msra.mxu0 0.0
        %758 = vmatprep.subr.mxu0 0.0
        %759 = vmatpush2.msra.mxu0 0.0
        %760 = vmatprep.subr.mxu0 0.0
        %761 = vmatpush2.msra.mxu0 0.0
        %762 = vmatprep.mubr.f32.mxu0 0.0
        %763 = vmatmul.mubr.f32.gmra.mxu0 %v683
        %v764 = vpop.f32.mrf.mxu0
        %v765 = vadd.f32 %v680, %v764
        %v766 = vpop.f32.mrf.mxu0
        %v767 = vadd.f32 %v680, %v766
        %768 = vdwg.mxu0
        %769 = vmatprep.subr.mxu0 0.0
        %770 = vmatpush1.msra.mxu0 0.0
        %771 = vmatprep.subr.mxu0 0.0
        %772 = vmatpush1.msra.mxu0 0.0
        %773 = vmatprep.subr.mxu0 0.0
        %774 = vmatpush1.msra.mxu0 0.0
        %775 = vmatprep.subr.mxu0 0.0
        %776 = vmatpush1.msra.mxu0 0.0
        %777 = vmatprep.subr.mxu0 0.0
        %778 = vmatpush1.msra.mxu0 0.0
        %779 = vmatprep.subr.mxu0 0.0
        %780 = vmatpush1.msra.mxu0 0.0
        %781 = vmatprep.subr.mxu0 0.0
        %782 = vmatpush1.msra.mxu0 0.0
        %783 = vmatprep.subr.mxu0 0.0
        %784 = vmatpush1.msra.mxu0 0.0
        %785 = vmatprep.subr.mxu0 0.0
        %786 = vmatpush1.msra.mxu0 0.0
        %787 = vmatprep.subr.mxu0 0.0
        %788 = vmatpush1.msra.mxu0 0.0
        %789 = vmatprep.subr.mxu0 0.0
        %790 = vmatpush1.msra.mxu0 0.0
        %791 = vmatprep.subr.mxu0 0.0
        %792 = vmatpush1.msra.mxu0 0.0
        %793 = vmatprep.subr.mxu0 0.0
        %794 = vmatpush1.msra.mxu0 0.0
        %795 = vmatprep.subr.mxu0 0.0
        %796 = vmatpush1.msra.mxu0 0.0
        %797 = vmatprep.subr.mxu0 0.0
        %798 = vmatpush1.msra.mxu0 0.0
        %799 = vmatprep.subr.mxu0 %v696
        %800 = vmatpush1.msra.mxu0 %v693
        %801 = vmatprep.subr.mxu0 0.0
        %802 = vmatpush2.msra.mxu0 0.0
        %803 = vmatprep.subr.mxu0 0.0
        %804 = vmatpush2.msra.mxu0 0.0
        %805 = vmatprep.subr.mxu0 0.0
        %806 = vmatpush2.msra.mxu0 0.0
        %807 = vmatprep.subr.mxu0 0.0
        %808 = vmatpush2.msra.mxu0 0.0
        %809 = vmatprep.subr.mxu0 0.0
        %810 = vmatpush2.msra.mxu0 0.0
        %811 = vmatprep.subr.mxu0 0.0
        %812 = vmatpush2.msra.mxu0 0.0
        %813 = vmatprep.subr.mxu0 0.0
        %814 = vmatpush2.msra.mxu0 0.0
        %815 = vmatprep.subr.mxu0 0.0
        %816 = vmatpush2.msra.mxu0 0.0
        %817 = vmatprep.subr.mxu0 0.0
        %818 = vmatpush2.msra.mxu0 0.0
        %819 = vmatprep.subr.mxu0 0.0
        %820 = vmatpush2.msra.mxu0 0.0
        %821 = vmatprep.subr.mxu0 0.0
        %822 = vmatpush2.msra.mxu0 0.0
        %823 = vmatprep.subr.mxu0 0.0
        %824 = vmatpush2.msra.mxu0 0.0
        %825 = vmatprep.subr.mxu0 0.0
        %826 = vmatpush2.msra.mxu0 0.0
        %827 = vmatprep.subr.mxu0 0.0
        %828 = vmatpush2.msra.mxu0 0.0
        %829 = vmatprep.subr.mxu0 0.0
        %830 = vmatpush2.msra.mxu0 0.0
        %831 = vmatprep.subr.mxu0 0.0
        %832 = vmatpush2.msra.mxu0 0.0
        %833 = vmatprep.mubr.f32.mxu0 0.0
        %834 = vmatmul.mubr.f32.gmra.mxu0 %v683
        %v835 = vpop.f32.mrf.mxu0
        %v836 = vadd.f32 %v680, %v835
        %v837 = vpop.f32.mrf.mxu0
        %v838 = vadd.f32 %v680, %v837
        %839 = vdwg.mxu0
        %v840 = vxor.u32 %v765, 2147483648
        %v841 = vxor.u32 %v767, 2147483648
        %v842 = vxor.u32 %v836, 2147483648
        %v843 = vxor.u32 %v838, 2147483648
        %v844 = vmul.f32 %v840, 1.442695
        %v845 = vpow.pop %v844
        %v846 = vmul.f32 %v841, 1.442695
        %v847 = vpow.pop %v846
        %v848 = vmul.f32 %v842, 1.442695
        %v849 = vpow.pop %v848
        %v850 = vmul.f32 %v843, 1.442695
        %v851 = vpow.pop %v850
        %v852 = vadd.f32 %v845, 1.0
        %v853 = vadd.f32 %v847, 1.0
        %v854 = vadd.f32 %v849, 1.0
        %v855 = vadd.f32 %v851, 1.0
        %v856 = vrcp.pop %v852
        %v857 = vmul.f32 1.0, %v856
        %v858 = vrcp.pop %v853
        %v859 = vmul.f32 1.0, %v858
        %v860 = vrcp.pop %v854
        %v861 = vmul.f32 1.0, %v860
        %v862 = vrcp.pop %v855
        %v863 = vmul.f32 1.0, %v862
        %v868 = vcombine.low %v857, %v859
        %v869 = vcombine.low %v861, %v863
        %v871 = vunpack.c.l.s4 1966171168
        %v872 = vunpack.c.0.s8 %v871
        %v873 = vlaneseq
        %v874 = vshrl.u32 %v873, 7
        %v875 = vsub.s32 %v872, %v874
        %v876 = vrot.slane %v868, %v875
        %v878 = vunpack.c.l.s4 1966171168
        %v879 = vunpack.c.0.s8 %v878
        %v880 = vlaneseq
        %v881 = vshrl.u32 %v880, 7
        %v882 = vsub.s32 %v879, %v881
        %v883 = vrot.slane %v869, %v882
        %v884 = vcombine.low %v876, %v883
        %v886 = vunpack.c.l.s4 1966171168
        %v887 = vunpack.c.0.s8 %v886
        %v888 = vlaneseq
        %v889 = vshrl.u32 %v888, 7
        %v890 = vsub.s32 %v887, %v889
        %v891 = vrot.slane %v884, %v890
        %v893 = vlaneseq
        %vm894 = vcmp.ge.s32.totalorder %v893, 0
        %vm895 = vcmp.lt.s32.totalorder %v893, 512
        %vm896 = vmand %vm894, %vm895
        %897 = vst.msk [vmem:[%s296] sm:$0xf] %vm896, %v891
        %s898 = sand.u32 %s186, 1
        %s899 = scalar_lea.sflag [#allocation5], %s898
        %s900 = sand.u32 %s186, 1
        %s901 = smul.addr %s900, 4
        %s902 = scalar_lea.vmem [#allocation6], %s901
        // Predicated region
        $region53: #{tpu_custom_call.1} parent=47 // pred_check
          %p903 = pneg %p196
        $region54: #{tpu_custom_call.1} parent=47 // pred_check_branch
          %905 = sbr.rel (%p903) target = $region56
        $region55: #{tpu_custom_call.1} parent=47 // pred_region
          %s906 = smul.u32 4, %s26
          %s908 = ssub.s32 64, 64
          %909 = vsyncadd %s899, %s908
          %s910 = smul.addr %s906, 16
          %s911 = scalar_lea.hbm %s7, %s910
          %s913 = sshll.u32 %s902, 4
          %s914 = int_to_ptr.vmem [resolvable:$true] %s913
          %916 = dma.vmem_to_hbm [thread:$0]  %s914, 64, %s911, %s899
        $region56: #{tpu_custom_call.1} parent=47 // pred_fallthru
          _
      $region48: #{tpu_custom_call.1} parent=5 // pred_fallthru
        _
      %p917 = scmp.le.s32.totalorder 2, %s21
      // Predicated region
      $region57: #{tpu_custom_call.1} parent=5 // pred_check
        %p918 = pneg %p917
      $region58: #{tpu_custom_call.1} parent=5 // pred_check_branch
        %920 = sbr.rel (%p918) target = $region60
      $region59: #{tpu_custom_call.1} parent=5 // pred_region
        %s921 = ssub.s32 %s21, 2
        // Predicated region
        $region61: #{tpu_custom_call.1} parent=59 // pred_check
          %p922 = pneg %p202
        $region62: #{tpu_custom_call.1} parent=59 // pred_check_branch
          %924 = sbr.rel (%p922) target = $region64
        $region63: #{tpu_custom_call.1} parent=59 // pred_region
          %s925 = sand.u32 %s187, 1
          %s926 = scalar_lea.sflag [#allocation5], %s925
          %s927 = sand.u32 %s187, 1
          %s928 = smul.addr %s927, 4
          %s929 = scalar_lea.vmem [#allocation6], %s928
          %930 = dma.done %s926, 64
        $region64: #{tpu_custom_call.1} parent=59 // pred_fallthru
          _
      $region60: #{tpu_custom_call.1} parent=5 // pred_fallthru
        _
    $region6: #{tpu_custom_call.1} parent=1 // loop_footer
      %s25 = sadd.s32 1, %s21
    $region7: #{tpu_custom_call.1} parent=1 // loop_footer_branch
      %20 = sbr.rel target = $region3
    $region8: #{tpu_custom_call.1} parent=1 // loop_exit
      _
    %931 = vsyncpa [#allocation4], 1
    %s932 = scalar_lea.sflag [#allocation4], 1
    %933 = vsyncpa %s932, 1
    %934 = vsyncpa [#allocation5], 1
    %s935 = scalar_lea.sflag [#allocation5], 1
    %936 = vsyncpa %s935, 1

</llo_original>
